<compile_context>
chip_gen: v7x
topology: tpu7x:2x2x1
jax: 0.10.0
libtpu: 0.0.40
codegen_flags: <defaults>
</compile_context>

<pallas_src>
import jax
import jax.numpy as jnp
from jax import lax
from jax.experimental import pallas as pl
from jax.experimental.pallas import tpu as pltpu

_INV_SQRT2 = 0.7071067811865476

# Whether we may request single-buffering (pl.Buffered(1)) for resident operands.
_SINGLE_BUFFER_OK = [hasattr(pl, "Buffered")]


def _round_up(x, m):
    return ((x + m - 1) // m) * m


def _gelu(h, exact):
    if exact:
        # torch.nn.GELU() default (approximate='none'), erf form.
        return 0.5 * h * (1.0 + lax.erf(h * _INV_SQRT2))
    # tanh form lowers to the EUP (separate VLIW slot) -> cheaper when parity allows.
    return jax.nn.gelu(h, approximate=True)


def _dot_f32acc(a, b, use_bf16):
    """MXU matmul with f32 accumulation. bf16 operands on the fast path."""
    if use_bf16:
        return jnp.dot(a.astype(jnp.bfloat16), b, preferred_element_type=jnp.float32)
    return jnp.dot(a, b, preferred_element_type=jnp.float32,
                   precision=lax.Precision.HIGHEST)


def _make_fused_kernel(use_bf16, exact_gelu):
    """Weights fully VMEM-resident; grid = batch tiles only."""
    def kernel(x_ref, w1_ref, b1_ref, w2_ref, b2_ref, o_ref):
        h = _dot_f32acc(x_ref[...], w1_ref[...], use_bf16) + b1_ref[...]
        h = _gelu(h, exact_gelu)
        y = _dot_f32acc(h, w2_ref[...], use_bf16) + b2_ref[...]
        o_ref[...] = y.astype(o_ref.dtype)          # lane-dense, unmasked store
    return kernel


def _make_htiled_kernel(use_bf16, exact_gelu):
    """Hidden-dim-tiled path: grid = (batch tiles, H chunks), f32 accumulator."""
    def kernel(x_ref, w1_ref, b1_ref, w2_ref, b2_ref, o_ref, acc_ref):
        hk = pl.program_id(1)

        @pl.when(hk == 0)
        def _init():
            acc_ref[...] = jnp.zeros_like(acc_ref)

        h = _dot_f32acc(x_ref[...], w1_ref[...], use_bf16) + b1_ref[...]
        h = _gelu(h, exact_gelu)
        acc_ref[...] += _dot_f32acc(h, w2_ref[...], use_bf16)

        @pl.when(hk == pl.num_programs(1) - 1)
        def _finalize():
            o_ref[...] = (acc_ref[...] + b2_ref[...]).astype(o_ref.dtype)
    return kernel


def prepare_mlp_params(w1, b1, w2, b2, *, use_bf16_matmul=True):
    """One-time layout plumbing (do this at model init, not per forward).

    w1: [D, H] (torch weight transposed to [in, out]); b1: [H]; w2: [H, O]; b2: [O].
    Pads H and O up to multiples of 128 (lane-dense) and casts weights to bf16
    on the fast path. Zero padding keeps the math exact: padded hidden units get
    GELU(0 + 0) = 0 and multiply zero w2 rows; padded output columns are sliced off.
    """
    D, H = w1.shape
    H2, O = w2.shape
    assert H2 == H, "w1/w2 hidden dims mismatch"
    Hp = _round_up(H, 128)
    Op = _round_up(O, 128)
    wdtype = jnp.bfloat16 if use_bf16_matmul else jnp.float32
    w1p = jnp.zeros((D, Hp), wdtype).at[:, :H].set(w1.astype(wdtype))
    w2p = jnp.zeros((Hp, Op), wdtype).at[:H, :O].set(w2.astype(wdtype))
    b1p = jnp.zeros((1, Hp), jnp.float32).at[0, :H].set(b1.astype(jnp.float32))
    b2p = jnp.zeros((1, Op), jnp.float32).at[0, :O].set(b2.astype(jnp.float32))
    return dict(w1=w1p, b1=b1p, w2=w2p, b2=b2p,
                D=D, H=H, O=O, Hp=Hp, Op=Op,
                use_bf16_matmul=use_bf16_matmul)


def _vmem_budget_bytes():
    """Generation-aware VMEM budget (~0.8x physical, fallback = v7x 64 MiB/TC)."""
    try:
        phys = int(pltpu.get_tpu_info().vmem_capacity_bytes)
    except Exception:
        phys = 64 << 20
    return max(int(phys * 0.8), 16 << 20)


def mlp_forward(x, params, *, exact_gelu=True, batch_tile=256, hidden_tile=None):
    """x: [B, D] -> [B, O]. `params` comes from prepare_mlp_params()."""
    B, D = x.shape
    assert D == params["D"], "input feature dim mismatch"
    O, Hp, Op = params["O"], params["Hp"], params["Op"]
    use_bf16 = params["use_bf16_matmul"]
    w1p, b1p, w2p, b2p = params["w1"], params["b1"], params["w2"], params["b2"]
    out_dtype = x.dtype

    # ---- batch tiling --------------------------------------------------------
    Bp8 = _round_up(B, 8)
    TB = min(Bp8, _round_up(max(batch_tile, 8), 8))
    if Bp8 >= 16:
        # Ensure >= 2 batch tiles so the "parallel" axis gives both v7x TCs work.
        TB = min(TB, _round_up(pl.cdiv(Bp8, 2), 8))
    n_b = pl.cdiv(B, TB)

    # ---- VMEM budget & path selection ---------------------------------------
    budget = _vmem_budget_bytes()
    witem = w1p.dtype.itemsize
    xbytes = TB * D * jnp.dtype(x.dtype).itemsize
    obytes = TB * Op * jnp.dtype(out_dtype).itemsize
    wbytes = (w1p.size + w2p.size) * witem
    bbytes = (b1p.size + b2p.size) * 4
    fused_need = wbytes + bbytes + 2 * (xbytes + obytes) + TB * Hp * 4
    use_htiled = (hidden_tile is not None) or (fused_need > int(0.75 * budget))

    flops = 2 * B * (D * Hp + Hp * Op)
    bytes_accessed = (B * D * jnp.dtype(x.dtype).itemsize + wbytes + bbytes
                      + B * Op * jnp.dtype(out_dtype).itemsize)
    cost = pl.CostEstimate(flops=flops, transcendentals=B * Hp,
                           bytes_accessed=bytes_accessed)

    # Hidden chunk size for the tiled path.
    if use_htiled:
        if hidden_tile is not None:
            TH = max(128, _round_up(hidden_tile, 128))
        else:
            TH = Hp
            while TH > 128:
                chunk = 2 * ((D * TH + TH * Op) * witem + TH * 4)   # dbl-buffered chunks
                fixed = 2 * (xbytes + obytes) + TB * Op * 4 + Op * 4
                if chunk + fixed <= int(0.75 * budget):
                    break
                TH -= 128
        TH = min(TH, Hp)
        n_h = pl.cdiv(Hp, TH)
        Hp_eff = n_h * TH
        if Hp_eff > Hp:
            # Extra zero padding stays exact (GELU(0)=0 times zero w2 rows).
            w1p = jnp.zeros((D, Hp_eff), w1p.dtype).at[:, :Hp].set(w1p)
            w2p = jnp.zeros((Hp_eff, Op), w2p.dtype).at[:Hp, :].set(w2p)
            b1p = jnp.zeros((1, Hp_eff), jnp.float32).at[:, :Hp].set(b1p)

    def _maybe_single(shape, index_map, single_buffer):
        # Grid-invariant operands: no pipelining needed -> single buffer.
        if single_buffer:
            return pl.BlockSpec(shape, index_map, pipeline_mode=pl.Buffered(1))
        return pl.BlockSpec(shape, index_map)

    def _run(single_buffer):
        if use_htiled:
            grid_spec = pltpu.PrefetchScalarGridSpec(
                num_scalar_prefetch=0,
                grid=(n_b, n_h),
                in_specs=[
                    pl.BlockSpec((TB, D), lambda i, k: (i, 0)),     # x (block idx const in k)
                    pl.BlockSpec((D, TH), lambda i, k: (0, k)),     # w1 H-chunk
                    pl.BlockSpec((1, TH), lambda i, k: (0, k)),     # b1 H-chunk
                    pl.BlockSpec((TH, Op), lambda i, k: (k, 0)),    # w2 H-chunk
                    _maybe_single((1, Op), lambda i, k: (0, 0), single_buffer),  # b2
                ],
                out_specs=pl.BlockSpec((TB, Op), lambda i, k: (i, 0)),
                scratch_shapes=[pltpu.VMEM((TB, Op), jnp.float32)],
            )
            kernel = _make_htiled_kernel(use_bf16, exact_gelu)
            dims = ("parallel", "arbitrary")
        else:
            grid_spec = pltpu.PrefetchScalarGridSpec(
                num_scalar_prefetch=0,
                grid=(n_b,),
                in_specs=[
                    pl.BlockSpec((TB, D), lambda i: (i, 0)),                       # x tile
                    _maybe_single((D, Hp), lambda i: (0, 0), single_buffer),       # w1
                    _maybe_single((1, Hp), lambda i: (0, 0), single_buffer),       # b1
                    _maybe_single((Hp, Op), lambda i: (0, 0), single_buffer),      # w2
                    _maybe_single((1, Op), lambda i: (0, 0), single_buffer),       # b2
                ],
                out_specs=pl.BlockSpec((TB, Op), lambda i: (i, 0)),
            )
            kernel = _make_fused_kernel(use_bf16, exact_gelu)
            dims = ("parallel",)

        return pl.pallas_call(
            kernel,
            out_shape=jax.ShapeDtypeStruct((B, Op), out_dtype),
            grid_spec=grid_spec,
            compiler_params=pltpu.CompilerParams(
                dimension_semantics=dims,
                vmem_limit_bytes=budget,
            ),
            cost_estimate=cost,
        )(x, w1p, b1p, w2p, b2p)

    try:
        out = _run(_SINGLE_BUFFER_OK[0])
    except Exception:
        if not _SINGLE_BUFFER_OK[0]:
            raise
        # This JAX/Mosaic build rejected pl.Buffered(1): fall back to default
        # double-buffering for the resident operands.
        _SINGLE_BUFFER_OK[0] = False
        out = _run(False)

    return out[:, :O]


def mlp_reference(x, w1, b1, w2, b2):
    h = jnp.dot(x, w1, precision=lax.Precision.HIGHEST) + b1
    h = jax.nn.gelu(h, approximate=False)
    return jnp.dot(h, w2, precision=lax.Precision.HIGHEST) + b2


if __name__ == "__main__":
    key = jax.random.PRNGKey(0)

    # ---- config 1: shapes implied by the module (input_dim -> input_dim//2 -> out)
    batch, input_dim, output_dim = 8, 32, 16
    hidden = input_dim // 2
    kx, k1, k2, k3, k4, key = jax.random.split(key, 6)
    x = jax.random.normal(kx, (batch, input_dim), jnp.float32)
    w1 = jax.random.normal(k1, (input_dim, hidden), jnp.float32) * 0.1
    b1 = jax.random.normal(k2, (hidden,), jnp.float32) * 0.1
    w2 = jax.random.normal(k3, (hidden, output_dim), jnp.float32) * 0.1
    b2 = jax.random.normal(k4, (output_dim,), jnp.float32) * 0.1
    ref = mlp_reference(x, w1, b1, w2, b2)

    # Fast default path: bf16 MXU operands, f32 accumulation.
    out_bf16 = mlp_forward(x, prepare_mlp_params(w1, b1, w2, b2, use_bf16_matmul=True))
    jax.block_until_ready(out_bf16)
    assert out_bf16.shape == (batch, output_dim)
    assert jnp.allclose(out_bf16, ref, atol=5e-2, rtol=5e-2), "bf16 fused path mismatch"

    # Torch-parity path: f32 operands, precision=HIGHEST, exact (erf) GELU.
    params_f32 = prepare_mlp_params(w1, b1, w2, b2, use_bf16_matmul=False)
    out_f32 = mlp_forward(x, params_f32)
    jax.block_until_ready(out_f32)
    assert jnp.allclose(out_f32, ref, atol=1e-5, rtol=1e-5), "f32 fused path mismatch"

    # ---- config 2: larger shapes to exercise ragged batch tiles (B=24, TB=16)
    # and the hidden-dim-tiled accumulator path (Hp=256 -> two 128-wide chunks).
    batch2, input_dim2, output_dim2 = 24, 384, 96
    hidden2 = input_dim2 // 2
    kx, k1, k2, k3, k4, key = jax.random.split(key, 6)
    x2 = jax.random.normal(kx, (batch2, input_dim2), jnp.float32)
    w1b = jax.random.normal(k1, (input_dim2, hidden2), jnp.float32) * 0.1
    b1b = jax.random.normal(k2, (hidden2,), jnp.float32) * 0.1
    w2b = jax.random.normal(k3, (hidden2, output_dim2), jnp.float32) * 0.1
    b2b = jax.random.normal(k4, (output_dim2,), jnp.float32) * 0.1
    ref2 = mlp_reference(x2, w1b, b1b, w2b, b2b)

    out2_bf16 = mlp_forward(x2, prepare_mlp_params(w1b, b1b, w2b, b2b, use_bf16_matmul=True))
    jax.block_until_ready(out2_bf16)
    assert out2_bf16.shape == (batch2, output_dim2)
    assert jnp.allclose(out2_bf16, ref2, atol=1e-1, rtol=5e-2), "bf16 fused path (cfg2) mismatch"

    # Force the hidden-dim-tiled path (normally auto-selected when resident
    # weights would overflow the VMEM budget, e.g. large MLPs on v7x).
    params2_f32 = prepare_mlp_params(w1b, b1b, w2b, b2b, use_bf16_matmul=False)
    out2_ht = mlp_forward(x2, params2_f32, hidden_tile=128)
    jax.block_until_ready(out2_ht)
    assert jnp.allclose(out2_ht, ref2, atol=1e-4, rtol=1e-4), "hidden-tiled path mismatch"

    print("KERNEL_OK")
</pallas_src>

<mosaic_0001>
module attributes {stable_mosaic.version = 11 : i64} {
  func.func @kernel(%arg0: i32, %arg1: memref<8x32xf32, #tpu.memory_space<vmem>>, %arg2: memref<32x128xbf16, #tpu.memory_space<vmem>>, %arg3: memref<1x128xf32, #tpu.memory_space<vmem>>, %arg4: memref<128x128xbf16, #tpu.memory_space<vmem>>, %arg5: memref<1x128xf32, #tpu.memory_space<vmem>>, %arg6: memref<8x128xf32, #tpu.memory_space<vmem>>) attributes {dimension_semantics = [#tpu.dimension_semantics<parallel>], iteration_bounds = array<i64: 1>, scalar_prefetch = 0 : i64, scratch_operands = 0 : i64, tpu.core_type = #tpu.core_type<tc>, window_params = [{transform_indices = @transform_0, window_bounds = array<i64: 8, 32>}, {pipeline_mode = #tpu.pipeline_mode<synchronous>, transform_indices = @transform_1, window_bounds = array<i64: 32, 128>}, {pipeline_mode = #tpu.pipeline_mode<synchronous>, transform_indices = @transform_2, window_bounds = array<i64: 1, 128>}, {pipeline_mode = #tpu.pipeline_mode<synchronous>, transform_indices = @transform_3, window_bounds = array<i64: 128, 128>}, {pipeline_mode = #tpu.pipeline_mode<synchronous>, transform_indices = @transform_4, window_bounds = array<i64: 1, 128>}, {transform_indices = @transform_5, window_bounds = array<i64: 8, 128>}]} {
    %c0 = arith.constant 0 : index
    %c0_0 = arith.constant 0 : index
    %0 = vector.load %arg1[%c0, %c0_0] : memref<8x32xf32, #tpu.memory_space<vmem>>, vector<8x32xf32>
    %c0_1 = arith.constant 0 : index
    %c0_2 = arith.constant 0 : index
    %1 = vector.load %arg2[%c0_1, %c0_2] : memref<32x128xbf16, #tpu.memory_space<vmem>>, vector<32x128xbf16>
    %2 = arith.truncf %0 : vector<8x32xf32> to vector<8x32xbf16>
    %cst = arith.constant dense<0.000000e+00> : vector<8x128xf32>
    %3 = tpu.matmul %2, %1, %cst {dimension_numbers = #tpu.dot_dimension_numbers<[1], [0], [0], [1], [0, 0, 1, 1], [], []>} : vector<8x32xbf16>, vector<32x128xbf16>, vector<8x128xf32> -> vector<8x128xf32>
    %c0_3 = arith.constant 0 : index
    %c0_4 = arith.constant 0 : index
    %4 = vector.load %arg3[%c0_3, %c0_4] : memref<1x128xf32, #tpu.memory_space<vmem>>, vector<1x128xf32>
    %5 = vector.broadcast %4 : vector<1x128xf32> to vector<8x128xf32>
    %6 = arith.addf %3, %5 : vector<8x128xf32>
    %cst_5 = arith.constant 5.000000e-01 : f32
    %7 = vector.broadcast %cst_5 : f32 to vector<8x128xf32>
    %8 = arith.mulf %7, %6 : vector<8x128xf32>
    %cst_6 = arith.constant 0.707106769 : f32
    %9 = vector.broadcast %cst_6 : f32 to vector<8x128xf32>
    %10 = arith.mulf %6, %9 : vector<8x128xf32>
    %11 = math.erf %10 : vector<8x128xf32>
    %cst_7 = arith.constant 1.000000e+00 : f32
    %12 = vector.broadcast %cst_7 : f32 to vector<8x128xf32>
    %13 = arith.addf %12, %11 : vector<8x128xf32>
    %14 = arith.mulf %8, %13 : vector<8x128xf32>
    %c0_8 = arith.constant 0 : index
    %c0_9 = arith.constant 0 : index
    %15 = vector.load %arg4[%c0_8, %c0_9] : memref<128x128xbf16, #tpu.memory_space<vmem>>, vector<128x128xbf16>
    %16 = arith.truncf %14 : vector<8x128xf32> to vector<8x128xbf16>
    %cst_10 = arith.constant dense<0.000000e+00> : vector<8x128xf32>
    %17 = tpu.matmul %16, %15, %cst_10 {dimension_numbers = #tpu.dot_dimension_numbers<[1], [0], [0], [1], [0, 0, 1, 1], [], []>} : vector<8x128xbf16>, vector<128x128xbf16>, vector<8x128xf32> -> vector<8x128xf32>
    %c0_11 = arith.constant 0 : index
    %c0_12 = arith.constant 0 : index
    %18 = vector.load %arg5[%c0_11, %c0_12] : memref<1x128xf32, #tpu.memory_space<vmem>>, vector<1x128xf32>
    %19 = vector.broadcast %18 : vector<1x128xf32> to vector<8x128xf32>
    %20 = arith.addf %17, %19 : vector<8x128xf32>
    %c0_13 = arith.constant 0 : index
    %c0_14 = arith.constant 0 : index
    %21 = vector.load %arg6[%c0_13, %c0_14] : memref<8x128xf32, #tpu.memory_space<vmem>>, vector<8x128xf32>
    tpu.vector_store %arg6[%c0_13, %c0_14], %20 {strides = array<i32>} : memref<8x128xf32, #tpu.memory_space<vmem>>, vector<8x128xf32>,
    return
  }
  func.func @transform_0(%arg0: i32) -> (i32, i32) {
    %c0_i32 = arith.constant 0 : i32
    %c0_i32_0 = arith.constant 0 : i32
    return %arg0, %c0_i32 : i32, i32
  }
  func.func @transform_1(%arg0: i32) -> (i32, i32) {
    %c0_i32 = arith.constant 0 : i32
    %c0_i32_0 = arith.constant 0 : i32
    %c0_i32_1 = arith.constant 0 : i32
    return %c0_i32, %c0_i32_0 : i32, i32
  }
  func.func @transform_2(%arg0: i32) -> (i32, i32) {
    %c0_i32 = arith.constant 0 : i32
    %c0_i32_0 = arith.constant 0 : i32
    %c0_i32_1 = arith.constant 0 : i32
    return %c0_i32, %c0_i32_0 : i32, i32
  }
  func.func @transform_3(%arg0: i32) -> (i32, i32) {
    %c0_i32 = arith.constant 0 : i32
    %c0_i32_0 = arith.constant 0 : i32
    %c0_i32_1 = arith.constant 0 : i32
    return %c0_i32, %c0_i32_0 : i32, i32
  }
  func.func @transform_4(%arg0: i32) -> (i32, i32) {
    %c0_i32 = arith.constant 0 : i32
    %c0_i32_0 = arith.constant 0 : i32
    %c0_i32_1 = arith.constant 0 : i32
    return %c0_i32, %c0_i32_0 : i32, i32
  }
  func.func @transform_5(%arg0: i32) -> (i32, i32) {
    %c0_i32 = arith.constant 0 : i32
    %c0_i32_0 = arith.constant 0 : i32
    return %arg0, %c0_i32 : i32, i32
  }
}

module attributes {stable_mosaic.version = 11 : i64} {
  func.func @kernel(%arg0: i32, %arg1: memref<8x32xf32, #tpu.memory_space<vmem>>, %arg2: memref<32x128xbf16, #tpu.memory_space<vmem>>, %arg3: memref<1x128xf32, #tpu.memory_space<vmem>>, %arg4: memref<128x128xbf16, #tpu.memory_space<vmem>>, %arg5: memref<1x128xf32, #tpu.memory_space<vmem>>, %arg6: memref<8x128xf32, #tpu.memory_space<vmem>>) attributes {dimension_semantics = [#tpu.dimension_semantics<parallel>], iteration_bounds = array<i64: 1>, scalar_prefetch = 0 : i64, scratch_operands = 0 : i64, tpu.core_type = #tpu.core_type<tc>, window_params = [{transform_indices = @transform_0, window_bounds = array<i64: 8, 32>}, {pipeline_mode = #tpu.pipeline_mode<synchronous>, transform_indices = @transform_1, window_bounds = array<i64: 32, 128>}, {pipeline_mode = #tpu.pipeline_mode<synchronous>, transform_indices = @transform_2, window_bounds = array<i64: 1, 128>}, {pipeline_mode = #tpu.pipeline_mode<synchronous>, transform_indices = @transform_3, window_bounds = array<i64: 128, 128>}, {pipeline_mode = #tpu.pipeline_mode<synchronous>, transform_indices = @transform_4, window_bounds = array<i64: 1, 128>}, {transform_indices = @transform_5, window_bounds = array<i64: 8, 128>}]} {
    %c0 = arith.constant 0 : index
    %c0_0 = arith.constant 0 : index
    %0 = vector.load %arg1[%c0, %c0_0] : memref<8x32xf32, #tpu.memory_space<vmem>>, vector<8x32xf32>
    %c0_1 = arith.constant 0 : index
    %c0_2 = arith.constant 0 : index
    %1 = vector.load %arg2[%c0_1, %c0_2] : memref<32x128xbf16, #tpu.memory_space<vmem>>, vector<32x128xbf16>
    %2 = arith.truncf %0 : vector<8x32xf32> to vector<8x32xbf16>
    %cst = arith.constant dense<0.000000e+00> : vector<8x128xf32>
    %3 = tpu.matmul %2, %1, %cst {dimension_numbers = #tpu.dot_dimension_numbers<[1], [0], [0], [1], [0, 0, 1, 1], [], []>} : vector<8x32xbf16>, vector<32x128xbf16>, vector<8x128xf32> -> vector<8x128xf32>
    %c0_3 = arith.constant 0 : index
    %c0_4 = arith.constant 0 : index
    %4 = vector.load %arg3[%c0_3, %c0_4] : memref<1x128xf32, #tpu.memory_space<vmem>>, vector<1x128xf32>
    %5 = vector.broadcast %4 : vector<1x128xf32> to vector<8x128xf32>
    %6 = arith.addf %3, %5 : vector<8x128xf32>
    %cst_5 = arith.constant 5.000000e-01 : f32
    %7 = vector.broadcast %cst_5 : f32 to vector<8x128xf32>
    %8 = arith.mulf %7, %6 : vector<8x128xf32>
    %cst_6 = arith.constant 0.707106769 : f32
    %9 = vector.broadcast %cst_6 : f32 to vector<8x128xf32>
    %10 = arith.mulf %6, %9 : vector<8x128xf32>
    %11 = math.erf %10 : vector<8x128xf32>
    %cst_7 = arith.constant 1.000000e+00 : f32
    %12 = vector.broadcast %cst_7 : f32 to vector<8x128xf32>
    %13 = arith.addf %12, %11 : vector<8x128xf32>
    %14 = arith.mulf %8, %13 : vector<8x128xf32>
    %c0_8 = arith.constant 0 : index
    %c0_9 = arith.constant 0 : index
    %15 = vector.load %arg4[%c0_8, %c0_9] : memref<128x128xbf16, #tpu.memory_space<vmem>>, vector<128x128xbf16>
    %16 = arith.truncf %14 : vector<8x128xf32> to vector<8x128xbf16>
    %cst_10 = arith.constant dense<0.000000e+00> : vector<8x128xf32>
    %17 = tpu.matmul %16, %15, %cst_10 {dimension_numbers = #tpu.dot_dimension_numbers<[1], [0], [0], [1], [0, 0, 1, 1], [], []>} : vector<8x128xbf16>, vector<128x128xbf16>, vector<8x128xf32> -> vector<8x128xf32>
    %c0_11 = arith.constant 0 : index
    %c0_12 = arith.constant 0 : index
    %18 = vector.load %arg5[%c0_11, %c0_12] : memref<1x128xf32, #tpu.memory_space<vmem>>, vector<1x128xf32>
    %19 = vector.broadcast %18 : vector<1x128xf32> to vector<8x128xf32>
    %20 = arith.addf %17, %19 : vector<8x128xf32>
    %c0_13 = arith.constant 0 : index
    %c0_14 = arith.constant 0 : index
    %21 = vector.load %arg6[%c0_13, %c0_14] : memref<8x128xf32, #tpu.memory_space<vmem>>, vector<8x128xf32>
    tpu.vector_store %arg6[%c0_13, %c0_14], %20 {strides = array<i32>} : memref<8x128xf32, #tpu.memory_space<vmem>>, vector<8x128xf32>,
    return
  }
  func.func @transform_0(%arg0: i32) -> (i32, i32) {
    %c0_i32 = arith.constant 0 : i32
    %c0_i32_0 = arith.constant 0 : i32
    return %arg0, %c0_i32 : i32, i32
  }
  func.func @transform_1(%arg0: i32) -> (i32, i32) {
    %c0_i32 = arith.constant 0 : i32
    %c0_i32_0 = arith.constant 0 : i32
    %c0_i32_1 = arith.constant 0 : i32
    return %c0_i32, %c0_i32_0 : i32, i32
  }
  func.func @transform_2(%arg0: i32) -> (i32, i32) {
    %c0_i32 = arith.constant 0 : i32
    %c0_i32_0 = arith.constant 0 : i32
    %c0_i32_1 = arith.constant 0 : i32
    return %c0_i32, %c0_i32_0 : i32, i32
  }
  func.func @transform_3(%arg0: i32) -> (i32, i32) {
    %c0_i32 = arith.constant 0 : i32
    %c0_i32_0 = arith.constant 0 : i32
    %c0_i32_1 = arith.constant 0 : i32
    return %c0_i32, %c0_i32_0 : i32, i32
  }
  func.func @transform_4(%arg0: i32) -> (i32, i32) {
    %c0_i32 = arith.constant 0 : i32
    %c0_i32_0 = arith.constant 0 : i32
    %c0_i32_1 = arith.constant 0 : i32
    return %c0_i32, %c0_i32_0 : i32, i32
  }
  func.func @transform_5(%arg0: i32) -> (i32, i32) {
    %c0_i32 = arith.constant 0 : i32
    %c0_i32_0 = arith.constant 0 : i32
    return %arg0, %c0_i32 : i32, i32
  }
}

</mosaic_0001>

<llo_original>
// kernel: tpu_custom_call.1
$region0: #{tpu_custom_call.1}
  #allocation0 [shape = 'u32[]', space=smem, size = 0x4, offset = 0x4, fixed_abs, tag = 'smem constant byte address 0x4 - core index']
  #allocation1 [shape = 'u32[144,128]{1,0:T(1,128)}', space=vmem, size = 0x12000, scoped, tag = 'internal scratch']
  %s0 = inlined_call_operand.hbm [shape: f32[8,32], index: 0, kind: input, shape index: {}]
  %s1 = inlined_call_operand.hbm [shape: bf16[32,128], index: 1, kind: input, shape index: {}]
  %s2 = inlined_call_operand.vmem [shape: f32[1,128], index: 2, kind: input, shape index: {}]
  %s3 = inlined_call_operand.hbm [shape: bf16[128,128], index: 3, kind: input, shape index: {}]
  %s4 = inlined_call_operand.vmem [shape: f32[1,128], index: 4, kind: input, shape index: {}]
  %s5 = inlined_call_operand.hbm [shape: f32[8,128], index: 5, kind: output, shape index: {}]
  %s6 = sld [smem:[#allocation0]]
  $region42: #{tpu_custom_call.1} parent=0
    _
  %s8 = ssub.s32 1, %s6
  %s9 = scalar_select 0, %s8, %s6
  $region1: #{tpu_custom_call.1} parent=0
    #allocation2 [shape = 'u8[4096]{0}', space=vmem, size = 0x1000, scoped, tag = 'input window, operand 0, single buffered']
    #allocation3 [shape = 's32[1]{0}', space=sflag, size = 0x4, scoped, tag = 'scoped memory for tpu_custom_call.1']
    #allocation4 [shape = 's32[1]{0}', space=sflag, size = 0x4, scoped, tag = 'scoped memory for tpu_custom_call.1']
    #allocation5 [shape = 'u8[8192]{0}', space=vmem, size = 0x2000, scoped, tag = 'input window, operand 1, single buffered']
    #allocation6 [shape = 's32[1]{0}', space=sflag, size = 0x4, scoped, tag = 'scoped memory for tpu_custom_call.1']
    #allocation7 [shape = 'u8[32768]{0}', space=vmem, size = 0x8000, scoped, tag = 'input window, operand 3, single buffered']
    #allocation8 [shape = 'u8[4096]{0}', space=vmem, size = 0x1000, scoped, tag = 'output window, operand 0, single buffered']
    %10 = vsyncpa [#allocation3], 0
    %11 = vsyncpa [#allocation6], 0
    %12 = vsyncpa [#allocation4], 0
    // Predicated region
    $region2: #{tpu_custom_call.1} parent=1 // pred_check
      _
    $region3: #{tpu_custom_call.1} parent=1 // pred_check_branch
      %14 = sbr.rel (0) target = $region5
    $region4: #{tpu_custom_call.1} parent=1 // pred_region
      %s16 = ssub.s32 128, 128
      %17 = vsyncadd [#allocation3], %s16
      %s19 = sshll.u32 [#allocation2], 4
      %s20 = int_to_ptr.vmem [resolvable:$true] %s19
      %22 = dma.hbm_to_vmem [thread:$0]  %s0, 128, %s20, [#allocation3]
    $region5: #{tpu_custom_call.1} parent=1 // pred_fallthru
      _
    // Predicated region
    $region6: #{tpu_custom_call.1} parent=1 // pred_check
      _
    $region7: #{tpu_custom_call.1} parent=1 // pred_check_branch
      %24 = sbr.rel (0) target = $region9
    $region8: #{tpu_custom_call.1} parent=1 // pred_region
      %s26 = ssub.s32 256, 256
      %27 = vsyncadd [#allocation6], %s26
      %s28 = sshll.u32 [#allocation5], 4
      %s29 = int_to_ptr.vmem [resolvable:$true] %s28
      %34 = dma.hbm_to_vmem [thread:$0]  %s1, 256, %s29, [#allocation6], 64, 64, 4
    $region9: #{tpu_custom_call.1} parent=1 // pred_fallthru
      _
    // Predicated region
    $region10: #{tpu_custom_call.1} parent=1 // pred_check
      _
    $region11: #{tpu_custom_call.1} parent=1 // pred_check_branch
      %36 = sbr.rel (0) target = $region13
    $region12: #{tpu_custom_call.1} parent=1 // pred_region
      _
    $region13: #{tpu_custom_call.1} parent=1 // pred_fallthru
      _
    // Predicated region
    $region14: #{tpu_custom_call.1} parent=1 // pred_check
      _
    $region15: #{tpu_custom_call.1} parent=1 // pred_check_branch
      %38 = sbr.rel (0) target = $region17
    $region16: #{tpu_custom_call.1} parent=1 // pred_region
      %s40 = ssub.s32 1024, 1024
      %41 = vsyncadd [#allocation6], %s40
      %s42 = sshll.u32 [#allocation7], 4
      %s43 = int_to_ptr.vmem [resolvable:$true] %s42
      %48 = dma.hbm_to_vmem [thread:$0]  %s3, 1024, %s43, [#allocation6], 64, 64, 4
    $region17: #{tpu_custom_call.1} parent=1 // pred_fallthru
      _
    // Predicated region
    $region18: #{tpu_custom_call.1} parent=1 // pred_check
      _
    $region19: #{tpu_custom_call.1} parent=1 // pred_check_branch
      %50 = sbr.rel (0) target = $region21
    $region20: #{tpu_custom_call.1} parent=1 // pred_region
      _
    $region21: #{tpu_custom_call.1} parent=1 // pred_fallthru
      _
    // Predicated region
    $region22: #{tpu_custom_call.1} parent=1 // pred_check
      _
    $region23: #{tpu_custom_call.1} parent=1 // pred_check_branch
      %52 = sbr.rel (0) target = $region25
    $region24: #{tpu_custom_call.1} parent=1 // pred_region
      %53 = dma.done [#allocation3], 128
    $region25: #{tpu_custom_call.1} parent=1 // pred_fallthru
      _
    // Predicated region
    $region26: #{tpu_custom_call.1} parent=1 // pred_check
      _
    $region27: #{tpu_custom_call.1} parent=1 // pred_check_branch
      %55 = sbr.rel (0) target = $region29
    $region28: #{tpu_custom_call.1} parent=1 // pred_region
      %56 = dma.done [#allocation6], 256
    $region29: #{tpu_custom_call.1} parent=1 // pred_fallthru
      _
    // Predicated region
    $region30: #{tpu_custom_call.1} parent=1 // pred_check
      _
    $region31: #{tpu_custom_call.1} parent=1 // pred_check_branch
      %58 = sbr.rel (0) target = $region33
    $region32: #{tpu_custom_call.1} parent=1 // pred_region
      %59 = dma.done [#allocation6], 1024
    $region33: #{tpu_custom_call.1} parent=1 // pred_fallthru
      _
    %v61 = vld [vmem:[#allocation2] sm:$0xff]
    %v62 = vld [vmem:[#allocation5] sm:$0xf]
    %v63 = vld [vmem:[#allocation5 + $0x4] sm:$0xf]
    %v64 = vld [vmem:[#allocation5 + $0x8] sm:$0xf]
    %v65 = vld [vmem:[#allocation5 + $0xc] sm:$0xf]
    %v66 = vpack.c.bf16 %v61, %v61
    %v67 = vld [vmem:[%s2] sm:$0x1]
    %v69 = vlaneseq
    %v70 = vshrl.u32 %v69, 7
    %v71 = vsub.s32 0, %v70
    %v72 = vrot.slane %v67, %v71
    %v78 = vunpack.c.l.b16 %v62
    %v79 = vunpack.c.l.b16 %v63
    %v80 = vunpack.c.l.b16 %v64
    %v81 = vunpack.c.l.b16 %v65
    %v82 = vpack.c.b16 %v79, %v78
    %v83 = vpack.c.b16 %v81, %v80
    %vm86 = vcmask 261120
    %v88 = vsel %vm86, %v66, 0
    %90 = vmatprep.subr.bf16.mxu0 0
    %91 = vmatpush1.bf16.msra.mxu0 %v82
    %92 = vmatprep.subr.bf16.mxu0 0
    %93 = vmatpush1.bf16.msra.mxu0 %v83
    %94 = vmatprep.subr.bf16.mxu0 0
    %95 = vmatpush1.bf16.msra.mxu0 0
    %96 = vmatprep.subr.bf16.mxu0 0
    %97 = vmatpush1.bf16.msra.mxu0 0
    %98 = vmatprep.subr.bf16.mxu0 0
    %99 = vmatpush1.bf16.msra.mxu0 0
    %100 = vmatprep.subr.bf16.mxu0 0
    %101 = vmatpush1.bf16.msra.mxu0 0
    %102 = vmatprep.subr.bf16.mxu0 0
    %103 = vmatpush1.bf16.msra.mxu0 0
    %104 = vmatprep.subr.bf16.mxu0 0
    %105 = vmatpush1.bf16.msra.mxu0 0
    %106 = vmatprep.subr.bf16.mxu0 0
    %107 = vmatpush1.bf16.msra.mxu0 0
    %108 = vmatprep.subr.bf16.mxu0 0
    %109 = vmatpush1.bf16.msra.mxu0 0
    %110 = vmatprep.subr.bf16.mxu0 0
    %111 = vmatpush1.bf16.msra.mxu0 0
    %112 = vmatprep.subr.bf16.mxu0 0
    %113 = vmatpush1.bf16.msra.mxu0 0
    %114 = vmatprep.subr.bf16.mxu0 0
    %115 = vmatpush1.bf16.msra.mxu0 0
    %116 = vmatprep.subr.bf16.mxu0 0
    %117 = vmatpush1.bf16.msra.mxu0 0
    %118 = vmatprep.subr.bf16.mxu0 0
    %119 = vmatpush1.bf16.msra.mxu0 0
    %120 = vmatprep.subr.bf16.mxu0 0
    %121 = vmatpush1.bf16.msra.mxu0 0
    %122 = vmatprep.mubr.bf16.mxu0 0
    %123 = vmatmul.mubr.bf16.gmra.mrb[0].mxu0 %v88
    %v124 = vpop.f32.mrb[0].mxu0
    %v125 = vadd.f32 %v72, %v124
    %v126 = vpop.f32.mrb[0].mxu0
    %v127 = vpop.f32.mrb[0].mxu0
    %v128 = vpop.f32.mrb[0].mxu0
    %129 = vdwg.mxu0
    %v130 = vmul.f32 %v125, 0.5
    %v131 = vmul.f32 %v125, 0.70710677
    %v132 = verf.f32.pop %v131
    %v133 = vadd.f32 %v132, 1.0
    %v134 = vmul.f32 %v130, %v133
    %v135 = vld [vmem:[#allocation7] sm:$0xf]
    %v136 = vld [vmem:[#allocation7 + $0x4] sm:$0xf]
    %v137 = vld [vmem:[#allocation7 + $0x8] sm:$0xf]
    %v138 = vld [vmem:[#allocation7 + $0xc] sm:$0xf]
    %v139 = vld [vmem:[#allocation7 + $0x10] sm:$0xf]
    %v140 = vld [vmem:[#allocation7 + $0x14] sm:$0xf]
    %v141 = vld [vmem:[#allocation7 + $0x18] sm:$0xf]
    %v142 = vld [vmem:[#allocation7 + $0x1c] sm:$0xf]
    %v143 = vld [vmem:[#allocation7 + $0x20] sm:$0xf]
    %v144 = vld [vmem:[#allocation7 + $0x24] sm:$0xf]
    %v145 = vld [vmem:[#allocation7 + $0x28] sm:$0xf]
    %v146 = vld [vmem:[#allocation7 + $0x2c] sm:$0xf]
    %v147 = vld [vmem:[#allocation7 + $0x30] sm:$0xf]
    %v148 = vld [vmem:[#allocation7 + $0x34] sm:$0xf]
    %v149 = vld [vmem:[#allocation7 + $0x38] sm:$0xf]
    %v150 = vld [vmem:[#allocation7 + $0x3c] sm:$0xf]
    %v151 = vpack.c.bf16 %v134, %v134
    %v152 = vld [vmem:[%s4] sm:$0x1]
    %v154 = vlaneseq
    %v155 = vshrl.u32 %v154, 7
    %v156 = vsub.s32 0, %v155
    %v157 = vrot.slane %v152, %v156
    %v175 = vunpack.c.l.b16 %v135
    %v176 = vunpack.c.l.b16 %v136
    %v177 = vunpack.c.l.b16 %v137
    %v178 = vunpack.c.l.b16 %v138
    %v179 = vunpack.c.l.b16 %v139
    %v180 = vunpack.c.l.b16 %v140
    %v181 = vunpack.c.l.b16 %v141
    %v182 = vunpack.c.l.b16 %v142
    %v183 = vunpack.c.l.b16 %v143
    %v184 = vunpack.c.l.b16 %v144
    %v185 = vunpack.c.l.b16 %v145
    %v186 = vunpack.c.l.b16 %v146
    %v187 = vunpack.c.l.b16 %v147
    %v188 = vunpack.c.l.b16 %v148
    %v189 = vunpack.c.l.b16 %v149
    %v190 = vunpack.c.l.b16 %v150
    %v191 = vpack.c.b16 %v176, %v175
    %v192 = vpack.c.b16 %v178, %v177
    %v193 = vpack.c.b16 %v180, %v179
    %v194 = vpack.c.b16 %v182, %v181
    %v195 = vpack.c.b16 %v184, %v183
    %v196 = vpack.c.b16 %v186, %v185
    %v197 = vpack.c.b16 %v188, %v187
    %v198 = vpack.c.b16 %v190, %v189
    %207 = vmatprep.subr.bf16.mxu0 0
    %208 = vmatpush1.bf16.msra.mxu0 %v191
    %209 = vmatprep.subr.bf16.mxu0 0
    %210 = vmatpush1.bf16.msra.mxu0 %v192
    %211 = vmatprep.subr.bf16.mxu0 0
    %212 = vmatpush1.bf16.msra.mxu0 %v193
    %213 = vmatprep.subr.bf16.mxu0 0
    %214 = vmatpush1.bf16.msra.mxu0 %v194
    %215 = vmatprep.subr.bf16.mxu0 0
    %216 = vmatpush1.bf16.msra.mxu0 %v195
    %217 = vmatprep.subr.bf16.mxu0 0
    %218 = vmatpush1.bf16.msra.mxu0 %v196
    %219 = vmatprep.subr.bf16.mxu0 0
    %220 = vmatpush1.bf16.msra.mxu0 %v197
    %221 = vmatprep.subr.bf16.mxu0 0
    %222 = vmatpush1.bf16.msra.mxu0 %v198
    %223 = vmatprep.subr.bf16.mxu0 0
    %224 = vmatpush1.bf16.msra.mxu0 0
    %225 = vmatprep.subr.bf16.mxu0 0
    %226 = vmatpush1.bf16.msra.mxu0 0
    %227 = vmatprep.subr.bf16.mxu0 0
    %228 = vmatpush1.bf16.msra.mxu0 0
    %229 = vmatprep.subr.bf16.mxu0 0
    %230 = vmatpush1.bf16.msra.mxu0 0
    %231 = vmatprep.subr.bf16.mxu0 0
    %232 = vmatpush1.bf16.msra.mxu0 0
    %233 = vmatprep.subr.bf16.mxu0 0
    %234 = vmatpush1.bf16.msra.mxu0 0
    %235 = vmatprep.subr.bf16.mxu0 0
    %236 = vmatpush1.bf16.msra.mxu0 0
    %237 = vmatprep.subr.bf16.mxu0 0
    %238 = vmatpush1.bf16.msra.mxu0 0
    %239 = vmatprep.mubr.bf16.mxu0 0
    %240 = vmatmul.mubr.bf16.gmra.mrb[0].mxu0 %v151
    %v241 = vpop.f32.mrb[0].mxu0
    %v242 = vadd.f32 %v157, %v241
    %v243 = vpop.f32.mrb[0].mxu0
    %v244 = vpop.f32.mrb[0].mxu0
    %v245 = vpop.f32.mrb[0].mxu0
    %246 = vdwg.mxu0
    %247 = vst [vmem:[#allocation8] sm:$0xff] %v242
    // Predicated region
    $region34: #{tpu_custom_call.1} parent=1 // pred_check
      _
    $region35: #{tpu_custom_call.1} parent=1 // pred_check_branch
      %249 = sbr.rel (0) target = $region37
    $region36: #{tpu_custom_call.1} parent=1 // pred_region
      %s251 = ssub.s32 128, 128
      %252 = vsyncadd [#allocation4], %s251
      %s254 = sshll.u32 [#allocation8], 4
      %s255 = int_to_ptr.vmem [resolvable:$true] %s254
      %257 = dma.vmem_to_hbm [thread:$0]  %s255, 128, %s5, [#allocation4]
    $region37: #{tpu_custom_call.1} parent=1 // pred_fallthru
      _
    // Predicated region
    $region38: #{tpu_custom_call.1} parent=1 // pred_check
      _
    $region39: #{tpu_custom_call.1} parent=1 // pred_check_branch
      %259 = sbr.rel (0) target = $region41
    $region40: #{tpu_custom_call.1} parent=1 // pred_region
      %260 = dma.done [#allocation4], 128
    $region41: #{tpu_custom_call.1} parent=1 // pred_fallthru
      _
    %261 = vsyncpa [#allocation3], 1
    %262 = vsyncpa [#allocation6], 1
    %263 = vsyncpa [#allocation4], 1

// kernel: tpu_custom_call.1
$region0: #{tpu_custom_call.1}
  #allocation0 [shape = 'u32[]', space=smem, size = 0x4, offset = 0x4, fixed_abs, tag = 'smem constant byte address 0x4 - core index']
  #allocation1 [shape = 'u32[144,128]{1,0:T(1,128)}', space=vmem, size = 0x12000, scoped, tag = 'internal scratch']
  %s0 = inlined_call_operand.hbm [shape: f32[8,32], index: 0, kind: input, shape index: {}]
  %s1 = inlined_call_operand.hbm [shape: bf16[32,128], index: 1, kind: input, shape index: {}]
  %s2 = inlined_call_operand.vmem [shape: f32[1,128], index: 2, kind: input, shape index: {}]
  %s3 = inlined_call_operand.hbm [shape: bf16[128,128], index: 3, kind: input, shape index: {}]
  %s4 = inlined_call_operand.vmem [shape: f32[1,128], index: 4, kind: input, shape index: {}]
  %s5 = inlined_call_operand.hbm [shape: f32[8,128], index: 5, kind: output, shape index: {}]
  %s6 = sld [smem:[#allocation0]]
  $region42: #{tpu_custom_call.1} parent=0
    _
  %s8 = ssub.s32 1, %s6
  %s9 = scalar_select 0, %s8, %s6
  $region1: #{tpu_custom_call.1} parent=0
    #allocation2 [shape = 'u8[4096]{0}', space=vmem, size = 0x1000, scoped, tag = 'input window, operand 0, single buffered']
    #allocation3 [shape = 's32[1]{0}', space=sflag, size = 0x4, scoped, tag = 'scoped memory for tpu_custom_call.1']
    #allocation4 [shape = 's32[1]{0}', space=sflag, size = 0x4, scoped, tag = 'scoped memory for tpu_custom_call.1']
    #allocation5 [shape = 'u8[8192]{0}', space=vmem, size = 0x2000, scoped, tag = 'input window, operand 1, single buffered']
    #allocation6 [shape = 's32[1]{0}', space=sflag, size = 0x4, scoped, tag = 'scoped memory for tpu_custom_call.1']
    #allocation7 [shape = 'u8[32768]{0}', space=vmem, size = 0x8000, scoped, tag = 'input window, operand 3, single buffered']
    #allocation8 [shape = 'u8[4096]{0}', space=vmem, size = 0x1000, scoped, tag = 'output window, operand 0, single buffered']
    %10 = vsyncpa [#allocation3], 0
    %11 = vsyncpa [#allocation6], 0
    %12 = vsyncpa [#allocation4], 0
    // Predicated region
    $region2: #{tpu_custom_call.1} parent=1 // pred_check
      _
    $region3: #{tpu_custom_call.1} parent=1 // pred_check_branch
      %14 = sbr.rel (0) target = $region5
    $region4: #{tpu_custom_call.1} parent=1 // pred_region
      %s16 = ssub.s32 128, 128
      %17 = vsyncadd [#allocation3], %s16
      %s19 = sshll.u32 [#allocation2], 4
      %s20 = int_to_ptr.vmem [resolvable:$true] %s19
      %22 = dma.hbm_to_vmem [thread:$0]  %s0, 128, %s20, [#allocation3]
    $region5: #{tpu_custom_call.1} parent=1 // pred_fallthru
      _
    // Predicated region
    $region6: #{tpu_custom_call.1} parent=1 // pred_check
      _
    $region7: #{tpu_custom_call.1} parent=1 // pred_check_branch
      %24 = sbr.rel (0) target = $region9
    $region8: #{tpu_custom_call.1} parent=1 // pred_region
      %s26 = ssub.s32 256, 256
      %27 = vsyncadd [#allocation6], %s26
      %s28 = sshll.u32 [#allocation5], 4
      %s29 = int_to_ptr.vmem [resolvable:$true] %s28
      %34 = dma.hbm_to_vmem [thread:$0]  %s1, 256, %s29, [#allocation6], 64, 64, 4
    $region9: #{tpu_custom_call.1} parent=1 // pred_fallthru
      _
    // Predicated region
    $region10: #{tpu_custom_call.1} parent=1 // pred_check
      _
    $region11: #{tpu_custom_call.1} parent=1 // pred_check_branch
      %36 = sbr.rel (0) target = $region13
    $region12: #{tpu_custom_call.1} parent=1 // pred_region
      _
    $region13: #{tpu_custom_call.1} parent=1 // pred_fallthru
      _
    // Predicated region
    $region14: #{tpu_custom_call.1} parent=1 // pred_check
      _
    $region15: #{tpu_custom_call.1} parent=1 // pred_check_branch
      %38 = sbr.rel (0) target = $region17
    $region16: #{tpu_custom_call.1} parent=1 // pred_region
      %s40 = ssub.s32 1024, 1024
      %41 = vsyncadd [#allocation6], %s40
      %s42 = sshll.u32 [#allocation7], 4
      %s43 = int_to_ptr.vmem [resolvable:$true] %s42
      %48 = dma.hbm_to_vmem [thread:$0]  %s3, 1024, %s43, [#allocation6], 64, 64, 4
    $region17: #{tpu_custom_call.1} parent=1 // pred_fallthru
      _
    // Predicated region
    $region18: #{tpu_custom_call.1} parent=1 // pred_check
      _
    $region19: #{tpu_custom_call.1} parent=1 // pred_check_branch
      %50 = sbr.rel (0) target = $region21
    $region20: #{tpu_custom_call.1} parent=1 // pred_region
      _
    $region21: #{tpu_custom_call.1} parent=1 // pred_fallthru
      _
    // Predicated region
    $region22: #{tpu_custom_call.1} parent=1 // pred_check
      _
    $region23: #{tpu_custom_call.1} parent=1 // pred_check_branch
      %52 = sbr.rel (0) target = $region25
    $region24: #{tpu_custom_call.1} parent=1 // pred_region
      %53 = dma.done [#allocation3], 128
    $region25: #{tpu_custom_call.1} parent=1 // pred_fallthru
      _
    // Predicated region
    $region26: #{tpu_custom_call.1} parent=1 // pred_check
      _
    $region27: #{tpu_custom_call.1} parent=1 // pred_check_branch
      %55 = sbr.rel (0) target = $region29
    $region28: #{tpu_custom_call.1} parent=1 // pred_region
      %56 = dma.done [#allocation6], 256
    $region29: #{tpu_custom_call.1} parent=1 // pred_fallthru
      _
    // Predicated region
    $region30: #{tpu_custom_call.1} parent=1 // pred_check
      _
    $region31: #{tpu_custom_call.1} parent=1 // pred_check_branch
      %58 = sbr.rel (0) target = $region33
    $region32: #{tpu_custom_call.1} parent=1 // pred_region
      %59 = dma.done [#allocation6], 1024
    $region33: #{tpu_custom_call.1} parent=1 // pred_fallthru
      _
    %v61 = vld [vmem:[#allocation2] sm:$0xff]
    %v62 = vld [vmem:[#allocation5] sm:$0xf]
    %v63 = vld [vmem:[#allocation5 + $0x4] sm:$0xf]
    %v64 = vld [vmem:[#allocation5 + $0x8] sm:$0xf]
    %v65 = vld [vmem:[#allocation5 + $0xc] sm:$0xf]
    %v66 = vpack.c.bf16 %v61, %v61
    %v67 = vld [vmem:[%s2] sm:$0x1]
    %v69 = vlaneseq
    %v70 = vshrl.u32 %v69, 7
    %v71 = vsub.s32 0, %v70
    %v72 = vrot.slane %v67, %v71
    %v78 = vunpack.c.l.b16 %v62
    %v79 = vunpack.c.l.b16 %v63
    %v80 = vunpack.c.l.b16 %v64
    %v81 = vunpack.c.l.b16 %v65
    %v82 = vpack.c.b16 %v79, %v78
    %v83 = vpack.c.b16 %v81, %v80
    %vm86 = vcmask 261120
    %v88 = vsel %vm86, %v66, 0
    %90 = vmatprep.subr.bf16.mxu0 0
    %91 = vmatpush1.bf16.msra.mxu0 %v82
    %92 = vmatprep.subr.bf16.mxu0 0
    %93 = vmatpush1.bf16.msra.mxu0 %v83
    %94 = vmatprep.subr.bf16.mxu0 0
    %95 = vmatpush1.bf16.msra.mxu0 0
    %96 = vmatprep.subr.bf16.mxu0 0
    %97 = vmatpush1.bf16.msra.mxu0 0
    %98 = vmatprep.subr.bf16.mxu0 0
    %99 = vmatpush1.bf16.msra.mxu0 0
    %100 = vmatprep.subr.bf16.mxu0 0
    %101 = vmatpush1.bf16.msra.mxu0 0
    %102 = vmatprep.subr.bf16.mxu0 0
    %103 = vmatpush1.bf16.msra.mxu0 0
    %104 = vmatprep.subr.bf16.mxu0 0
    %105 = vmatpush1.bf16.msra.mxu0 0
    %106 = vmatprep.subr.bf16.mxu0 0
    %107 = vmatpush1.bf16.msra.mxu0 0
    %108 = vmatprep.subr.bf16.mxu0 0
    %109 = vmatpush1.bf16.msra.mxu0 0
    %110 = vmatprep.subr.bf16.mxu0 0
    %111 = vmatpush1.bf16.msra.mxu0 0
    %112 = vmatprep.subr.bf16.mxu0 0
    %113 = vmatpush1.bf16.msra.mxu0 0
    %114 = vmatprep.subr.bf16.mxu0 0
    %115 = vmatpush1.bf16.msra.mxu0 0
    %116 = vmatprep.subr.bf16.mxu0 0
    %117 = vmatpush1.bf16.msra.mxu0 0
    %118 = vmatprep.subr.bf16.mxu0 0
    %119 = vmatpush1.bf16.msra.mxu0 0
    %120 = vmatprep.subr.bf16.mxu0 0
    %121 = vmatpush1.bf16.msra.mxu0 0
    %122 = vmatprep.mubr.bf16.mxu0 0
    %123 = vmatmul.mubr.bf16.gmra.mrb[0].mxu0 %v88
    %v124 = vpop.f32.mrb[0].mxu0
    %v125 = vadd.f32 %v72, %v124
    %v126 = vpop.f32.mrb[0].mxu0
    %v127 = vpop.f32.mrb[0].mxu0
    %v128 = vpop.f32.mrb[0].mxu0
    %129 = vdwg.mxu0
    %v130 = vmul.f32 %v125, 0.5
    %v131 = vmul.f32 %v125, 0.70710677
    %v132 = verf.f32.pop %v131
    %v133 = vadd.f32 %v132, 1.0
    %v134 = vmul.f32 %v130, %v133
    %v135 = vld [vmem:[#allocation7] sm:$0xf]
    %v136 = vld [vmem:[#allocation7 + $0x4] sm:$0xf]
    %v137 = vld [vmem:[#allocation7 + $0x8] sm:$0xf]
    %v138 = vld [vmem:[#allocation7 + $0xc] sm:$0xf]
    %v139 = vld [vmem:[#allocation7 + $0x10] sm:$0xf]
    %v140 = vld [vmem:[#allocation7 + $0x14] sm:$0xf]
    %v141 = vld [vmem:[#allocation7 + $0x18] sm:$0xf]
    %v142 = vld [vmem:[#allocation7 + $0x1c] sm:$0xf]
    %v143 = vld [vmem:[#allocation7 + $0x20] sm:$0xf]
    %v144 = vld [vmem:[#allocation7 + $0x24] sm:$0xf]
    %v145 = vld [vmem:[#allocation7 + $0x28] sm:$0xf]
    %v146 = vld [vmem:[#allocation7 + $0x2c] sm:$0xf]
    %v147 = vld [vmem:[#allocation7 + $0x30] sm:$0xf]
    %v148 = vld [vmem:[#allocation7 + $0x34] sm:$0xf]
    %v149 = vld [vmem:[#allocation7 + $0x38] sm:$0xf]
    %v150 = vld [vmem:[#allocation7 + $0x3c] sm:$0xf]
    %v151 = vpack.c.bf16 %v134, %v134
    %v152 = vld [vmem:[%s4] sm:$0x1]
    %v154 = vlaneseq
    %v155 = vshrl.u32 %v154, 7
    %v156 = vsub.s32 0, %v155
    %v157 = vrot.slane %v152, %v156
    %v175 = vunpack.c.l.b16 %v135
    %v176 = vunpack.c.l.b16 %v136
    %v177 = vunpack.c.l.b16 %v137
    %v178 = vunpack.c.l.b16 %v138
    %v179 = vunpack.c.l.b16 %v139
    %v180 = vunpack.c.l.b16 %v140
    %v181 = vunpack.c.l.b16 %v141
    %v182 = vunpack.c.l.b16 %v142
    %v183 = vunpack.c.l.b16 %v143
    %v184 = vunpack.c.l.b16 %v144
    %v185 = vunpack.c.l.b16 %v145
    %v186 = vunpack.c.l.b16 %v146
    %v187 = vunpack.c.l.b16 %v147
    %v188 = vunpack.c.l.b16 %v148
    %v189 = vunpack.c.l.b16 %v149
    %v190 = vunpack.c.l.b16 %v150
    %v191 = vpack.c.b16 %v176, %v175
    %v192 = vpack.c.b16 %v178, %v177
    %v193 = vpack.c.b16 %v180, %v179
    %v194 = vpack.c.b16 %v182, %v181
    %v195 = vpack.c.b16 %v184, %v183
    %v196 = vpack.c.b16 %v186, %v185
    %v197 = vpack.c.b16 %v188, %v187
    %v198 = vpack.c.b16 %v190, %v189
    %207 = vmatprep.subr.bf16.mxu0 0
    %208 = vmatpush1.bf16.msra.mxu0 %v191
    %209 = vmatprep.subr.bf16.mxu0 0
    %210 = vmatpush1.bf16.msra.mxu0 %v192
    %211 = vmatprep.subr.bf16.mxu0 0
    %212 = vmatpush1.bf16.msra.mxu0 %v193
    %213 = vmatprep.subr.bf16.mxu0 0
    %214 = vmatpush1.bf16.msra.mxu0 %v194
    %215 = vmatprep.subr.bf16.mxu0 0
    %216 = vmatpush1.bf16.msra.mxu0 %v195
    %217 = vmatprep.subr.bf16.mxu0 0
    %218 = vmatpush1.bf16.msra.mxu0 %v196
    %219 = vmatprep.subr.bf16.mxu0 0
    %220 = vmatpush1.bf16.msra.mxu0 %v197
    %221 = vmatprep.subr.bf16.mxu0 0
    %222 = vmatpush1.bf16.msra.mxu0 %v198
    %223 = vmatprep.subr.bf16.mxu0 0
    %224 = vmatpush1.bf16.msra.mxu0 0
    %225 = vmatprep.subr.bf16.mxu0 0
    %226 = vmatpush1.bf16.msra.mxu0 0
    %227 = vmatprep.subr.bf16.mxu0 0
    %228 = vmatpush1.bf16.msra.mxu0 0
    %229 = vmatprep.subr.bf16.mxu0 0
    %230 = vmatpush1.bf16.msra.mxu0 0
    %231 = vmatprep.subr.bf16.mxu0 0
    %232 = vmatpush1.bf16.msra.mxu0 0
    %233 = vmatprep.subr.bf16.mxu0 0
    %234 = vmatpush1.bf16.msra.mxu0 0
    %235 = vmatprep.subr.bf16.mxu0 0
    %236 = vmatpush1.bf16.msra.mxu0 0
    %237 = vmatprep.subr.bf16.mxu0 0
    %238 = vmatpush1.bf16.msra.mxu0 0
    %239 = vmatprep.mubr.bf16.mxu0 0
    %240 = vmatmul.mubr.bf16.gmra.mrb[0].mxu0 %v151
    %v241 = vpop.f32.mrb[0].mxu0
    %v242 = vadd.f32 %v157, %v241
    %v243 = vpop.f32.mrb[0].mxu0
    %v244 = vpop.f32.mrb[0].mxu0
    %v245 = vpop.f32.mrb[0].mxu0
    %246 = vdwg.mxu0
    %247 = vst [vmem:[#allocation8] sm:$0xff] %v242
    // Predicated region
    $region34: #{tpu_custom_call.1} parent=1 // pred_check
      _
    $region35: #{tpu_custom_call.1} parent=1 // pred_check_branch
      %249 = sbr.rel (0) target = $region37
    $region36: #{tpu_custom_call.1} parent=1 // pred_region
      %s251 = ssub.s32 128, 128
      %252 = vsyncadd [#allocation4], %s251
      %s254 = sshll.u32 [#allocation8], 4
      %s255 = int_to_ptr.vmem [resolvable:$true] %s254
      %257 = dma.vmem_to_hbm [thread:$0]  %s255, 128, %s5, [#allocation4]
    $region37: #{tpu_custom_call.1} parent=1 // pred_fallthru
      _
    // Predicated region
    $region38: #{tpu_custom_call.1} parent=1 // pred_check
      _
    $region39: #{tpu_custom_call.1} parent=1 // pred_check_branch
      %259 = sbr.rel (0) target = $region41
    $region40: #{tpu_custom_call.1} parent=1 // pred_region
      %260 = dma.done [#allocation4], 128
    $region41: #{tpu_custom_call.1} parent=1 // pred_fallthru
      _
    %261 = vsyncpa [#allocation3], 1
    %262 = vsyncpa [#allocation6], 1
    %263 = vsyncpa [#allocation4], 1

</llo_original>
